<compile_context>
chip_gen: v7x
topology: tpu7x:2x2x1
jax: 0.10.0
libtpu: 0.0.40
codegen_flags: <defaults>
</compile_context>

<pallas_src>
import jax
import jax.numpy as jnp
from jax.experimental import pallas as pl
from jax.experimental.pallas import tpu as pltpu

_LANES = 128
_FEATS = 2  # nn.Linear(2, 1, bias=False)


def _linear_kernel(x_ref, d_ref, o_ref):
    # x_ref: (block_rows, 256) slab of 128 interleaved (x0, x1) sample pairs.
    # d_ref: (256, 128) constant de-interleave matrix with the weight folded
    #        in: D[2j, j] = w0, D[2j+1, j] = w1, so x_slab @ D computes
    #        w0*x0 + w1*x1 for each of the 128 samples per row.
    x = x_ref[...].astype(jnp.float32)
    o_ref[...] = jnp.dot(
        x, d_ref[...], preferred_element_type=jnp.float32
    ).astype(o_ref.dtype)


def linear_model_forward(x, weight, *, block_rows=8192):
    """Pallas equivalent of LinearModel.forward: (x @ W.T).squeeze(1)."""
    n, f = x.shape
    assert f == _FEATS and weight.shape == (1, _FEATS)
    out_dtype = x.dtype
    w = weight.reshape(_FEATS).astype(jnp.float32)

    rows = n // _LANES          # full lane-dense rows (128 samples each)
    n_main = rows * _LANES      # 128-aligned prefix handled by the kernel

    if rows == 0:
        # Tiny N: pallas_call fixed overhead dominates; plain XLA is faster.
        return jnp.dot(x.astype(jnp.float32), w).astype(out_dtype)

    # Zero-copy view of the contiguous 128-aligned prefix: no column split,
    # no pad, no extra HBM pass over x.
    x_main = x[:n_main].reshape(rows, _FEATS * _LANES)

    # Constant de-interleave matrix with the weight folded in (256x128,
    # ~128 KiB, stays resident in VMEM across the whole grid).
    d = jnp.kron(jnp.eye(_LANES, dtype=jnp.float32), w.reshape(_FEATS, 1))

    # Dtype-aware sublane multiple: the (8,128) min tile only holds for 4-byte
    # dtypes; packed dtypes need 16 (2-byte) / 32 (1-byte) row multiples.
    sub = {1: 32, 2: 16}.get(jnp.dtype(x.dtype).itemsize, 8)
    block_rows = max(sub, (block_rows // sub) * sub)      # enforce multiple
    block_rows = min(block_rows, pl.cdiv(rows, sub) * sub)
    if rows > 2 * sub:
        # Guarantee >= 2 grid blocks so the "parallel" axis can shard across
        # v7x's two TensorCores (neutral on single-TC v5e/v6e).
        block_rows = min(block_rows, pl.cdiv(pl.cdiv(rows, 2), sub) * sub)
    grid = pl.cdiv(rows, block_rows)   # ragged edge block is masked by Pallas

    out = pl.pallas_call(
        _linear_kernel,
        out_shape=jax.ShapeDtypeStruct((rows, _LANES), out_dtype),
        grid=(grid,),
        in_specs=[
            pl.BlockSpec((block_rows, _FEATS * _LANES), lambda i: (i, 0)),  # x slab
            pl.BlockSpec((_FEATS * _LANES, _LANES), lambda i: (0, 0)),      # D (resident)
        ],
        out_specs=pl.BlockSpec((block_rows, _LANES), lambda i: (i, 0)),
        compiler_params=pltpu.CompilerParams(
            dimension_semantics=("parallel",),
            vmem_limit_bytes=48 * 1024 * 1024,
        ),
    )(x_main, d)

    y_main = out.reshape(n_main)   # zero-copy (contiguous)
    if n_main == n:
        return y_main

    # <128-element ragged tail: tiny XLA epilogue (cheaper than a full-array
    # pad + output-slice round trip).
    y_tail = jnp.dot(x[n_main:].astype(jnp.float32), w).astype(out_dtype)
    return jnp.concatenate([y_main, y_tail])


if __name__ == "__main__":
    key = jax.random.PRNGKey(0)
    k1, k2, k3, k4 = jax.random.split(key, 4)
    weight = jnp.array([[1.0, -5.0]], dtype=jnp.float32)  # module's fixed init

    forward = jax.jit(linear_model_forward)

    def ref(x):
        return (x @ weight.T)[:, 0]

    # 128-aligned N -> fully zero-copy path, single block.
    x1 = jax.random.normal(k1, (1024, 2), dtype=jnp.float32)
    y1 = jax.block_until_ready(forward(x1, weight))
    assert y1.shape == (1024,) and jnp.allclose(y1, ref(x1), atol=1e-5)

    # Non-aligned N -> aligned prefix through Pallas + tiny XLA tail.
    x2 = jax.random.normal(k2, (1000, 2), dtype=jnp.float32)
    y2 = jax.block_until_ready(forward(x2, weight))
    assert y2.shape == (1000,) and jnp.allclose(y2, ref(x2), atol=1e-5)

    # Multi-block grid (rows=32 -> 2 "parallel" blocks).
    x3 = jax.random.normal(k3, (4096, 2), dtype=jnp.float32)
    y3 = jax.block_until_ready(forward(x3, weight))
    assert y3.shape == (4096,) and jnp.allclose(y3, ref(x3), atol=1e-5)

    # Tiny N -> plain XLA fast path.
    x4 = jax.random.normal(k4, (8, 2), dtype=jnp.float32)
    y4 = jax.block_until_ready(forward(x4, weight))
    assert y4.shape == (8,) and jnp.allclose(y4, ref(x4), atol=1e-5)

    print("KERNEL_OK")
</pallas_src>

<mosaic_0001>
module attributes {stable_mosaic.version = 11 : i64} {
  func.func @_linear_kernel(%arg0: i32, %arg1: memref<8x256xf32, #tpu.memory_space<vmem>>, %arg2: memref<256x128xf32, #tpu.memory_space<vmem>>, %arg3: memref<8x128xf32, #tpu.memory_space<vmem>>) attributes {dimension_semantics = [#tpu.dimension_semantics<parallel>], iteration_bounds = array<i64: 1>, scalar_prefetch = 0 : i64, scratch_operands = 0 : i64, tpu.core_type = #tpu.core_type<tc>, window_params = [{transform_indices = @transform_0, window_bounds = array<i64: 8, 256>}, {pipeline_mode = #tpu.pipeline_mode<synchronous>, transform_indices = @transform_1, window_bounds = array<i64: 256, 128>}, {transform_indices = @transform_2, window_bounds = array<i64: 8, 128>}]} {
    %c0 = arith.constant 0 : index
    %c0_0 = arith.constant 0 : index
    %0 = vector.load %arg1[%c0, %c0_0] : memref<8x256xf32, #tpu.memory_space<vmem>>, vector<8x256xf32>
    %c0_1 = arith.constant 0 : index
    %c0_2 = arith.constant 0 : index
    %1 = vector.load %arg2[%c0_1, %c0_2] : memref<256x128xf32, #tpu.memory_space<vmem>>, vector<256x128xf32>
    %cst = arith.constant dense<0.000000e+00> : vector<8x128xf32>
    %2 = tpu.matmul %0, %1, %cst {dimension_numbers = #tpu.dot_dimension_numbers<[1], [0], [0], [1], [0, 0, 1, 1], [], []>} : vector<8x256xf32>, vector<256x128xf32>, vector<8x128xf32> -> vector<8x128xf32>
    %c0_3 = arith.constant 0 : index
    %c0_4 = arith.constant 0 : index
    %3 = vector.load %arg3[%c0_3, %c0_4] : memref<8x128xf32, #tpu.memory_space<vmem>>, vector<8x128xf32>
    tpu.vector_store %arg3[%c0_3, %c0_4], %2 {strides = array<i32>} : memref<8x128xf32, #tpu.memory_space<vmem>>, vector<8x128xf32>,
    return
  }
  func.func @transform_0(%arg0: i32) -> (i32, i32) {
    %c0_i32 = arith.constant 0 : i32
    %c0_i32_0 = arith.constant 0 : i32
    return %arg0, %c0_i32 : i32, i32
  }
  func.func @transform_1(%arg0: i32) -> (i32, i32) {
    %c0_i32 = arith.constant 0 : i32
    %c0_i32_0 = arith.constant 0 : i32
    %c0_i32_1 = arith.constant 0 : i32
    return %c0_i32, %c0_i32_0 : i32, i32
  }
  func.func @transform_2(%arg0: i32) -> (i32, i32) {
    %c0_i32 = arith.constant 0 : i32
    %c0_i32_0 = arith.constant 0 : i32
    return %arg0, %c0_i32 : i32, i32
  }
}

</mosaic_0001>

<llo_original>
// kernel: linear_model_forward.1
$region0: #{linear_model_forward.1}
  #allocation0 [shape = 'u32[]', space=smem, size = 0x4, offset = 0x4, fixed_abs, tag = 'smem constant byte address 0x4 - core index']
  #allocation1 [shape = 'u32[144,128]{1,0:T(1,128)}', space=vmem, size = 0x12000, scoped, tag = 'internal scratch']
  %s0 = inlined_call_operand.vmem [shape: f32[8,256], index: 0, kind: input, shape index: {}]
  %s1 = inlined_call_operand.vmem [shape: f32[256,128], index: 1, kind: input, shape index: {}]
  %s2 = inlined_call_operand.hbm [shape: f32[8,128], index: 2, kind: output, shape index: {}]
  %s3 = sld [smem:[#allocation0]]
  $region18: #{linear_model_forward.1} parent=0
    _
  %s5 = ssub.s32 1, %s3
  %s6 = scalar_select 0, %s5, %s3
  $region1: #{linear_model_forward.1} parent=0
    #allocation2 [shape = 'u8[4096]{0}', space=vmem, size = 0x1000, scoped, tag = 'output window, operand 0, single buffered']
    #allocation3 [shape = 's32[1]{0}', space=sflag, size = 0x4, scoped, tag = 'scoped memory for linear_model_forward.1']
    %7 = vsyncpa [#allocation3], 0
    // Predicated region
    $region2: #{linear_model_forward.1} parent=1 // pred_check
      _
    $region3: #{linear_model_forward.1} parent=1 // pred_check_branch
      %9 = sbr.rel (0) target = $region5
    $region4: #{linear_model_forward.1} parent=1 // pred_region
      _
    $region5: #{linear_model_forward.1} parent=1 // pred_fallthru
      _
    // Predicated region
    $region6: #{linear_model_forward.1} parent=1 // pred_check
      _
    $region7: #{linear_model_forward.1} parent=1 // pred_check_branch
      %11 = sbr.rel (0) target = $region9
    $region8: #{linear_model_forward.1} parent=1 // pred_region
      _
    $region9: #{linear_model_forward.1} parent=1 // pred_fallthru
      _
    %v12 = vld [vmem:[%s0] sm:$0xff]
    %v13 = vld [vmem:[%s0 + $0x8] sm:$0xff]
    %v14 = vld [vmem:[%s1] sm:$0xff]
    %v15 = vld [vmem:[%s1 + $0x8] sm:$0xff]
    %v16 = vld [vmem:[%s1 + $0x10] sm:$0xff]
    %v17 = vld [vmem:[%s1 + $0x18] sm:$0xff]
    %v18 = vld [vmem:[%s1 + $0x20] sm:$0xff]
    %v19 = vld [vmem:[%s1 + $0x28] sm:$0xff]
    %v20 = vld [vmem:[%s1 + $0x30] sm:$0xff]
    %v21 = vld [vmem:[%s1 + $0x38] sm:$0xff]
    %v22 = vld [vmem:[%s1 + $0x40] sm:$0xff]
    %v23 = vld [vmem:[%s1 + $0x48] sm:$0xff]
    %v24 = vld [vmem:[%s1 + $0x50] sm:$0xff]
    %v25 = vld [vmem:[%s1 + $0x58] sm:$0xff]
    %v26 = vld [vmem:[%s1 + $0x60] sm:$0xff]
    %v27 = vld [vmem:[%s1 + $0x68] sm:$0xff]
    %v28 = vld [vmem:[%s1 + $0x70] sm:$0xff]
    %v29 = vld [vmem:[%s1 + $0x78] sm:$0xff]
    %v30 = vld [vmem:[%s1 + $0x80] sm:$0xff]
    %v31 = vld [vmem:[%s1 + $0x88] sm:$0xff]
    %v32 = vld [vmem:[%s1 + $0x90] sm:$0xff]
    %v33 = vld [vmem:[%s1 + $0x98] sm:$0xff]
    %v34 = vld [vmem:[%s1 + $0xa0] sm:$0xff]
    %v35 = vld [vmem:[%s1 + $0xa8] sm:$0xff]
    %v36 = vld [vmem:[%s1 + $0xb0] sm:$0xff]
    %v37 = vld [vmem:[%s1 + $0xb8] sm:$0xff]
    %v38 = vld [vmem:[%s1 + $0xc0] sm:$0xff]
    %v39 = vld [vmem:[%s1 + $0xc8] sm:$0xff]
    %v40 = vld [vmem:[%s1 + $0xd0] sm:$0xff]
    %v41 = vld [vmem:[%s1 + $0xd8] sm:$0xff]
    %v42 = vld [vmem:[%s1 + $0xe0] sm:$0xff]
    %v43 = vld [vmem:[%s1 + $0xe8] sm:$0xff]
    %v44 = vld [vmem:[%s1 + $0xf0] sm:$0xff]
    %v45 = vld [vmem:[%s1 + $0xf8] sm:$0xff]
    %46 = vmatprep.subr.mxu0 0.0
    %47 = vmatpush1.msra.mxu0 %v14
    %48 = vmatprep.subr.mxu0 0.0
    %49 = vmatpush1.msra.mxu0 %v15
    %50 = vmatprep.subr.mxu0 0.0
    %51 = vmatpush1.msra.mxu0 %v16
    %52 = vmatprep.subr.mxu0 0.0
    %53 = vmatpush1.msra.mxu0 %v17
    %54 = vmatprep.subr.mxu0 0.0
    %55 = vmatpush1.msra.mxu0 %v18
    %56 = vmatprep.subr.mxu0 0.0
    %57 = vmatpush1.msra.mxu0 %v19
    %58 = vmatprep.subr.mxu0 0.0
    %59 = vmatpush1.msra.mxu0 %v20
    %60 = vmatprep.subr.mxu0 0.0
    %61 = vmatpush1.msra.mxu0 %v21
    %62 = vmatprep.subr.mxu0 0.0
    %63 = vmatpush1.msra.mxu0 %v22
    %64 = vmatprep.subr.mxu0 0.0
    %65 = vmatpush1.msra.mxu0 %v23
    %66 = vmatprep.subr.mxu0 0.0
    %67 = vmatpush1.msra.mxu0 %v24
    %68 = vmatprep.subr.mxu0 0.0
    %69 = vmatpush1.msra.mxu0 %v25
    %70 = vmatprep.subr.mxu0 0.0
    %71 = vmatpush1.msra.mxu0 %v26
    %72 = vmatprep.subr.mxu0 0.0
    %73 = vmatpush1.msra.mxu0 %v27
    %74 = vmatprep.subr.mxu0 0.0
    %75 = vmatpush1.msra.mxu0 %v28
    %76 = vmatprep.subr.mxu0 0.0
    %77 = vmatpush1.msra.mxu0 %v29
    %78 = vmatprep.subr.mxu0 0.0
    %79 = vmatpush1.msra.mxu0 %v30
    %80 = vmatprep.subr.mxu0 0.0
    %81 = vmatpush1.msra.mxu0 %v31
    %82 = vmatprep.subr.mxu0 0.0
    %83 = vmatpush1.msra.mxu0 %v32
    %84 = vmatprep.subr.mxu0 0.0
    %85 = vmatpush1.msra.mxu0 %v33
    %86 = vmatprep.subr.mxu0 0.0
    %87 = vmatpush1.msra.mxu0 %v34
    %88 = vmatprep.subr.mxu0 0.0
    %89 = vmatpush1.msra.mxu0 %v35
    %90 = vmatprep.subr.mxu0 0.0
    %91 = vmatpush1.msra.mxu0 %v36
    %92 = vmatprep.subr.mxu0 0.0
    %93 = vmatpush1.msra.mxu0 %v37
    %94 = vmatprep.subr.mxu0 0.0
    %95 = vmatpush1.msra.mxu0 %v38
    %96 = vmatprep.subr.mxu0 0.0
    %97 = vmatpush1.msra.mxu0 %v39
    %98 = vmatprep.subr.mxu0 0.0
    %99 = vmatpush1.msra.mxu0 %v40
    %100 = vmatprep.subr.mxu0 0.0
    %101 = vmatpush1.msra.mxu0 %v41
    %102 = vmatprep.subr.mxu0 0.0
    %103 = vmatpush1.msra.mxu0 %v42
    %104 = vmatprep.subr.mxu0 0.0
    %105 = vmatpush1.msra.mxu0 %v43
    %106 = vmatprep.subr.mxu0 0.0
    %107 = vmatpush1.msra.mxu0 %v44
    %108 = vmatprep.subr.mxu0 0.0
    %109 = vmatpush1.msra.mxu0 %v45
    %110 = vmatprep.mubr.f32.mxu0 %v13
    %111 = vmatmul.mubr.f32.gmra.mrb[0].mxu0 %v12
    %v112 = vpop.f32.mrb[0].mxu0
    %v113 = vadd.f32 0.0, %v112
    %v114 = vpop.f32.mrb[0].mxu0
    %115 = vdwg.mxu0
    %116 = vst [vmem:[#allocation2] sm:$0xff] %v113
    // Predicated region
    $region10: #{linear_model_forward.1} parent=1 // pred_check
      _
    $region11: #{linear_model_forward.1} parent=1 // pred_check_branch
      %118 = sbr.rel (0) target = $region13
    $region12: #{linear_model_forward.1} parent=1 // pred_region
      %s120 = ssub.s32 128, 128
      %121 = vsyncadd [#allocation3], %s120
      %s123 = sshll.u32 [#allocation2], 4
      %s124 = int_to_ptr.vmem [resolvable:$true] %s123
      %126 = dma.vmem_to_hbm [thread:$0]  %s124, 128, %s2, [#allocation3]
    $region13: #{linear_model_forward.1} parent=1 // pred_fallthru
      _
    // Predicated region
    $region14: #{linear_model_forward.1} parent=1 // pred_check
      _
    $region15: #{linear_model_forward.1} parent=1 // pred_check_branch
      %128 = sbr.rel (0) target = $region17
    $region16: #{linear_model_forward.1} parent=1 // pred_region
      %129 = dma.done [#allocation3], 128
    $region17: #{linear_model_forward.1} parent=1 // pred_fallthru
      _
    %130 = vsyncpa [#allocation3], 1

</llo_original>
